<compile_context>
chip_gen: v7x
topology: tpu7x:2x2x1
jax: 0.10.0
libtpu: 0.0.40
codegen_flags: <defaults>
</compile_context>

<pallas_src>
import jax
import jax.numpy as jnp
from jax.experimental import pallas as pl
from jax.experimental.pallas import tpu as pltpu

LANE = 128     # TPU lane width: final layer's output padded to a multiple of this
SUBLANE = 8    # sublane granularity for the batch (second-minor) dimension


def dqn_kernel(x_ref, w1_ref, b1_ref, w2_ref, b2_ref, w3_ref, b3_ref, o_ref):
    # fc1 + ReLU : bf16 x bf16 MXU matmul, f32 accumulate, f32 bias add
    x = x_ref[...].astype(jnp.bfloat16)
    h1 = jnp.dot(x, w1_ref[...], preferred_element_type=jnp.float32)
    h1 = jnp.maximum(h1 + b1_ref[...], 0.0)
    # fc2 + ReLU
    h2 = jnp.dot(h1.astype(jnp.bfloat16), w2_ref[...],
                 preferred_element_type=jnp.float32)
    h2 = jnp.maximum(h2 + b2_ref[...], 0.0)
    # fc3 (no activation), lane-padded to 128 output columns
    out = jnp.dot(h2.astype(jnp.bfloat16), w3_ref[...],
                  preferred_element_type=jnp.float32)
    o_ref[...] = (out + b3_ref[...]).astype(o_ref.dtype)


def _round_up(n, m):
    return ((n + m - 1) // m) * m


def prepare_params(params):
    """One-time prep for the kernel: bf16 weights (MXU inputs), f32 biases,
    fc3 weight/bias zero-padded to a multiple of 128 output lanes."""
    w3, b3 = params["w3"], params["b3"]
    h2_dim, out_dim = w3.shape
    out_pad = pl.cdiv(out_dim, LANE) * LANE
    w3p = jnp.zeros((h2_dim, out_pad), jnp.bfloat16).at[:, :out_dim].set(
        w3.astype(jnp.bfloat16))
    b3p = jnp.zeros((1, out_pad), jnp.float32).at[:, :out_dim].set(
        b3.astype(jnp.float32))
    return {
        "w1": params["w1"].astype(jnp.bfloat16),
        "b1": params["b1"].astype(jnp.float32),
        "w2": params["w2"].astype(jnp.bfloat16),
        "b2": params["b2"].astype(jnp.float32),
        "w3p": w3p,
        "b3p": b3p,
        "out_dim": out_dim,
    }


def dqn_forward(x, prepared, *, block_b=2048):
    """Fused DQNetwork forward pass.

    x:        (B, input_dim) float32 -- feed the WHOLE batch in one call.
    prepared: output of prepare_params() (bf16 weights, lane-padded fc3).
    Returns (B, out_dim) float32 Q-values.
    """
    w1, b1 = prepared["w1"], prepared["b1"]
    w2, b2 = prepared["w2"], prepared["b2"]
    w3p, b3p = prepared["w3p"], prepared["b3p"]
    out_dim = prepared["out_dim"]

    B, input_dim = x.shape
    h1_dim = w1.shape[1]
    h2_dim = w2.shape[1]
    out_pad = w3p.shape[1]

    # Batch tile: always a multiple of 8 (sublane), and capped at ~half the
    # (sublane-rounded) batch so the grid has >= 2 "parallel" steps and both
    # v7x TensorCores get work.  On v5e/v6e (1 TC) this just keeps per-step
    # overhead amortized.
    tb = max(SUBLANE, (block_b // SUBLANE) * SUBLANE)
    half = _round_up(pl.cdiv(B, 2), SUBLANE)
    tb = max(SUBLANE, min(tb, half))
    b_pad = _round_up(B, tb)
    if b_pad != B:
        x_in = jnp.zeros((b_pad, input_dim), x.dtype).at[:B, :].set(x)
    else:
        x_in = x
    grid = (b_pad // tb,)

    resident = lambda shape: pl.BlockSpec(shape, lambda i: (0, 0))

    cost = pl.CostEstimate(
        flops=2 * b_pad * (input_dim * h1_dim + h1_dim * h2_dim + h2_dim * out_pad),
        transcendentals=0,
        bytes_accessed=(
            4 * b_pad * input_dim                                      # x (f32)
            + 2 * (input_dim * h1_dim + h1_dim * h2_dim + h2_dim * out_pad)  # bf16 weights
            + 4 * (h1_dim + h2_dim + out_pad)                          # f32 biases
            + 4 * b_pad * out_pad                                      # output (f32)
        ),
    )

    out_padded = pl.pallas_call(
        dqn_kernel,
        out_shape=jax.ShapeDtypeStruct((b_pad, out_pad), jnp.float32),
        grid=grid,
        in_specs=[
            pl.BlockSpec((tb, input_dim), lambda i: (i, 0)),  # x tile streams
            resident((input_dim, h1_dim)),                    # w1 (bf16, resident)
            resident((1, h1_dim)),                            # b1
            resident((h1_dim, h2_dim)),                       # w2 (bf16, resident)
            resident((1, h2_dim)),                            # b2
            resident((h2_dim, out_pad)),                      # w3 (bf16, lane-padded)
            resident((1, out_pad)),                           # b3 (lane-padded)
        ],
        out_specs=pl.BlockSpec((tb, out_pad), lambda i: (i, 0)),
        compiler_params=pltpu.CompilerParams(
            dimension_semantics=("parallel",),                # shards across TCs on v7x
        ),
        cost_estimate=cost,
    )(x_in, w1, b1, w2, b2, w3p, b3p)

    # Pad lanes / pad rows are exact zeros, so latency-critical large-B callers
    # (e.g. action argmax) can consume out_padded directly and skip this slice.
    return out_padded[:B, :out_dim]


def init_params(key, input_dim, output_dim):
    """Deterministic synthetic init (PyTorch-Linear-like uniform fan-in scaling)."""
    ks = jax.random.split(key, 6)

    def lin(kw, kb, fan_in, fan_out):
        bound = 1.0 / jnp.sqrt(jnp.float32(fan_in))
        w = jax.random.uniform(kw, (fan_in, fan_out), jnp.float32, -bound, bound)
        b = jax.random.uniform(kb, (1, fan_out), jnp.float32, -bound, bound)
        return w, b

    w1, b1 = lin(ks[0], ks[1], input_dim, 128)
    w2, b2 = lin(ks[2], ks[3], 128, 64)
    w3, b3 = lin(ks[4], ks[5], 64, output_dim)
    return {"w1": w1, "b1": b1, "w2": w2, "b2": b2, "w3": w3, "b3": b3}


def reference_forward(x, p):
    h1 = jnp.maximum(x @ p["w1"] + p["b1"], 0.0)
    h2 = jnp.maximum(h1 @ p["w2"] + p["b2"], 0.0)
    return h2 @ p["w3"] + p["b3"]


if __name__ == "__main__":
    input_dim = 16   # small state vector
    output_dim = 4   # number of discrete actions
    batch = 256      # whole replay/env batch in one call

    key = jax.random.PRNGKey(0)
    k_x, k_p = jax.random.split(key)
    x = jax.random.normal(k_x, (batch, input_dim), jnp.float32)
    params = init_params(k_p, input_dim, output_dim)
    prepared = prepare_params(params)   # one-time: bf16 cast + fc3 lane-padding

    # default block_b=2048 is capped to tb=128 here -> grid=(2,), exercising the
    # batch grid, resident weights, and the >=2-step parallel axis.
    out = jax.block_until_ready(dqn_forward(x, prepared))
    ref = reference_forward(x, params)   # f32 reference
    assert out.shape == (batch, output_dim)
    # bf16 MXU inputs -> looser tolerance than the pure-f32 version
    assert jnp.allclose(out, ref, atol=5e-2, rtol=5e-2), float(
        jnp.max(jnp.abs(out - ref)))

    # also check the non-tile-aligned / tiny-batch path (padding branch)
    out_small = jax.block_until_ready(dqn_forward(x[:7], prepared))
    assert out_small.shape == (7, output_dim)
    assert jnp.allclose(out_small, ref[:7], atol=5e-2, rtol=5e-2)

    print("KERNEL_OK")
</pallas_src>

<mosaic_0001>
module attributes {stable_mosaic.version = 11 : i64} {
  func.func @dqn_kernel(%arg0: i32, %arg1: memref<128x16xf32, #tpu.memory_space<vmem>>, %arg2: memref<16x128xbf16, #tpu.memory_space<vmem>>, %arg3: memref<1x128xf32, #tpu.memory_space<vmem>>, %arg4: memref<128x64xbf16, #tpu.memory_space<vmem>>, %arg5: memref<1x64xf32, #tpu.memory_space<vmem>>, %arg6: memref<64x128xbf16, #tpu.memory_space<vmem>>, %arg7: memref<1x128xf32, #tpu.memory_space<vmem>>, %arg8: memref<128x128xf32, #tpu.memory_space<vmem>>) attributes {dimension_semantics = [#tpu.dimension_semantics<parallel>], iteration_bounds = array<i64: 2>, scalar_prefetch = 0 : i64, scratch_operands = 0 : i64, tpu.core_type = #tpu.core_type<tc>, window_params = [{transform_indices = @transform_0, window_bounds = array<i64: 128, 16>}, {pipeline_mode = #tpu.pipeline_mode<synchronous>, transform_indices = @transform_1, window_bounds = array<i64: 16, 128>}, {pipeline_mode = #tpu.pipeline_mode<synchronous>, transform_indices = @transform_2, window_bounds = array<i64: 1, 128>}, {pipeline_mode = #tpu.pipeline_mode<synchronous>, transform_indices = @transform_3, window_bounds = array<i64: 128, 64>}, {pipeline_mode = #tpu.pipeline_mode<synchronous>, transform_indices = @transform_4, window_bounds = array<i64: 1, 64>}, {pipeline_mode = #tpu.pipeline_mode<synchronous>, transform_indices = @transform_5, window_bounds = array<i64: 64, 128>}, {pipeline_mode = #tpu.pipeline_mode<synchronous>, transform_indices = @transform_6, window_bounds = array<i64: 1, 128>}, {transform_indices = @transform_7, window_bounds = array<i64: 128, 128>}]} {
    %c0 = arith.constant 0 : index
    %c0_0 = arith.constant 0 : index
    %0 = vector.load %arg1[%c0, %c0_0] : memref<128x16xf32, #tpu.memory_space<vmem>>, vector<128x16xf32>
    %1 = arith.truncf %0 : vector<128x16xf32> to vector<128x16xbf16>
    %c0_1 = arith.constant 0 : index
    %c0_2 = arith.constant 0 : index
    %2 = vector.load %arg2[%c0_1, %c0_2] : memref<16x128xbf16, #tpu.memory_space<vmem>>, vector<16x128xbf16>
    %cst = arith.constant dense<0.000000e+00> : vector<128x128xf32>
    %3 = tpu.matmul %1, %2, %cst {dimension_numbers = #tpu.dot_dimension_numbers<[1], [0], [0], [1], [0, 0, 1, 1], [], []>} : vector<128x16xbf16>, vector<16x128xbf16>, vector<128x128xf32> -> vector<128x128xf32>
    %c0_3 = arith.constant 0 : index
    %c0_4 = arith.constant 0 : index
    %4 = vector.load %arg3[%c0_3, %c0_4] : memref<1x128xf32, #tpu.memory_space<vmem>>, vector<1x128xf32>
    %5 = vector.broadcast %4 : vector<1x128xf32> to vector<128x128xf32>
    %6 = arith.addf %3, %5 : vector<128x128xf32>
    %cst_5 = arith.constant 0.000000e+00 : f32
    %7 = vector.broadcast %cst_5 : f32 to vector<128x128xf32>
    %8 = arith.maximumf %6, %7 : vector<128x128xf32>
    %9 = arith.truncf %8 : vector<128x128xf32> to vector<128x128xbf16>
    %c0_6 = arith.constant 0 : index
    %c0_7 = arith.constant 0 : index
    %10 = vector.load %arg4[%c0_6, %c0_7] : memref<128x64xbf16, #tpu.memory_space<vmem>>, vector<128x64xbf16>
    %cst_8 = arith.constant dense<0.000000e+00> : vector<128x64xf32>
    %11 = tpu.matmul %9, %10, %cst_8 {dimension_numbers = #tpu.dot_dimension_numbers<[1], [0], [0], [1], [0, 0, 1, 1], [], []>} : vector<128x128xbf16>, vector<128x64xbf16>, vector<128x64xf32> -> vector<128x64xf32>
    %c0_9 = arith.constant 0 : index
    %c0_10 = arith.constant 0 : index
    %12 = vector.load %arg5[%c0_9, %c0_10] : memref<1x64xf32, #tpu.memory_space<vmem>>, vector<1x64xf32>
    %13 = vector.broadcast %12 : vector<1x64xf32> to vector<128x64xf32>
    %14 = arith.addf %11, %13 : vector<128x64xf32>
    %cst_11 = arith.constant 0.000000e+00 : f32
    %15 = vector.broadcast %cst_11 : f32 to vector<128x64xf32>
    %16 = arith.maximumf %14, %15 : vector<128x64xf32>
    %17 = arith.truncf %16 : vector<128x64xf32> to vector<128x64xbf16>
    %c0_12 = arith.constant 0 : index
    %c0_13 = arith.constant 0 : index
    %18 = vector.load %arg6[%c0_12, %c0_13] : memref<64x128xbf16, #tpu.memory_space<vmem>>, vector<64x128xbf16>
    %cst_14 = arith.constant dense<0.000000e+00> : vector<128x128xf32>
    %19 = tpu.matmul %17, %18, %cst_14 {dimension_numbers = #tpu.dot_dimension_numbers<[1], [0], [0], [1], [0, 0, 1, 1], [], []>} : vector<128x64xbf16>, vector<64x128xbf16>, vector<128x128xf32> -> vector<128x128xf32>
    %c0_15 = arith.constant 0 : index
    %c0_16 = arith.constant 0 : index
    %20 = vector.load %arg7[%c0_15, %c0_16] : memref<1x128xf32, #tpu.memory_space<vmem>>, vector<1x128xf32>
    %21 = vector.broadcast %20 : vector<1x128xf32> to vector<128x128xf32>
    %22 = arith.addf %19, %21 : vector<128x128xf32>
    %c0_17 = arith.constant 0 : index
    %c0_18 = arith.constant 0 : index
    %23 = vector.load %arg8[%c0_17, %c0_18] : memref<128x128xf32, #tpu.memory_space<vmem>>, vector<128x128xf32>
    tpu.vector_store %arg8[%c0_17, %c0_18], %22 {strides = array<i32>} : memref<128x128xf32, #tpu.memory_space<vmem>>, vector<128x128xf32>,
    return
  }
  func.func @transform_0(%arg0: i32) -> (i32, i32) {
    %c0_i32 = arith.constant 0 : i32
    %c0_i32_0 = arith.constant 0 : i32
    return %arg0, %c0_i32 : i32, i32
  }
  func.func @transform_1(%arg0: i32) -> (i32, i32) {
    %c0_i32 = arith.constant 0 : i32
    %c0_i32_0 = arith.constant 0 : i32
    %c0_i32_1 = arith.constant 0 : i32
    return %c0_i32, %c0_i32_0 : i32, i32
  }
  func.func @transform_2(%arg0: i32) -> (i32, i32) {
    %c0_i32 = arith.constant 0 : i32
    %c0_i32_0 = arith.constant 0 : i32
    %c0_i32_1 = arith.constant 0 : i32
    return %c0_i32, %c0_i32_0 : i32, i32
  }
  func.func @transform_3(%arg0: i32) -> (i32, i32) {
    %c0_i32 = arith.constant 0 : i32
    %c0_i32_0 = arith.constant 0 : i32
    %c0_i32_1 = arith.constant 0 : i32
    return %c0_i32, %c0_i32_0 : i32, i32
  }
  func.func @transform_4(%arg0: i32) -> (i32, i32) {
    %c0_i32 = arith.constant 0 : i32
    %c0_i32_0 = arith.constant 0 : i32
    %c0_i32_1 = arith.constant 0 : i32
    return %c0_i32, %c0_i32_0 : i32, i32
  }
  func.func @transform_5(%arg0: i32) -> (i32, i32) {
    %c0_i32 = arith.constant 0 : i32
    %c0_i32_0 = arith.constant 0 : i32
    %c0_i32_1 = arith.constant 0 : i32
    return %c0_i32, %c0_i32_0 : i32, i32
  }
  func.func @transform_6(%arg0: i32) -> (i32, i32) {
    %c0_i32 = arith.constant 0 : i32
    %c0_i32_0 = arith.constant 0 : i32
    %c0_i32_1 = arith.constant 0 : i32
    return %c0_i32, %c0_i32_0 : i32, i32
  }
  func.func @transform_7(%arg0: i32) -> (i32, i32) {
    %c0_i32 = arith.constant 0 : i32
    %c0_i32_0 = arith.constant 0 : i32
    return %arg0, %c0_i32 : i32, i32
  }
}

</mosaic_0001>

<llo_original>
// kernel: tpu_custom_call.1
$region0: #{tpu_custom_call.1}
  #allocation0 [shape = 'u32[]', space=smem, size = 0x4, offset = 0x4, fixed_abs, tag = 'smem constant byte address 0x4 - core index']
  #allocation1 [shape = 'u32[144,128]{1,0:T(1,128)}', space=vmem, size = 0x12000, scoped, tag = 'internal scratch']
  %s0 = inlined_call_operand.vmem [shape: f32[256,16], index: 0, kind: input, shape index: {}]
  %s1 = inlined_call_operand.vmem [shape: bf16[16,128], index: 1, kind: input, shape index: {}]
  %s2 = inlined_call_operand.vmem [shape: f32[1,128], index: 2, kind: input, shape index: {}]
  %s3 = inlined_call_operand.vmem [shape: bf16[128,64], index: 3, kind: input, shape index: {}]
  %s4 = inlined_call_operand.vmem [shape: f32[1,64], index: 4, kind: input, shape index: {}]
  %s5 = inlined_call_operand.vmem [shape: bf16[64,128], index: 5, kind: input, shape index: {}]
  %s6 = inlined_call_operand.vmem [shape: f32[1,128], index: 6, kind: input, shape index: {}]
  %s7 = inlined_call_operand.hbm [shape: f32[256,128], index: 7, kind: output, shape index: {}]
  %s8 = sld [smem:[#allocation0]]
  $region61: #{tpu_custom_call.1} parent=0
    _
  %s10 = ssub.s32 1, %s8
  %s11 = scalar_select 0, %s10, %s8
  $region1: #{tpu_custom_call.1} parent=0
    #allocation2 [shape = 'u8[131072]{0}', space=vmem, size = 0x20000, scoped, tag = 'output window, operand 0']
    #allocation3 [shape = 's32[2]{0}', space=sflag, size = 0x8, scoped, tag = 'scoped memory for tpu_custom_call.1']
    %12 = vsyncpa [#allocation3], 0
    %s13 = scalar_lea.sflag [#allocation3], 1
    %14 = vsyncpa %s13, 0
    loop: start=0, step=1, limit=4
    $region2: #{tpu_custom_call.1} parent=1 // loop_pre_header
      _
    $region3: #{tpu_custom_call.1} parent=1 // loop_header
      %s16 = sphi 0, %s20
      %p17 = scmp.ge.s32.totalorder %s16, 4
      %s26 = sphi 0, %s28
      %s29 = sphi 0, %s26
      %s30 = sphi 0, %s29
      %s46 = sphi 0, %s30
      %s50 = sphi 0, %s50
      %s52 = sphi 0, %s50
      %s53 = sphi 0, %s52
      %s67 = sphi 0, %s53
      %s71 = sphi 0, %s71
      %s73 = sphi 0, %s71
      %s74 = sphi 0, %s73
      %s88 = sphi 0, %s74
      %s92 = sphi 0, %s92
      %s94 = sphi 0, %s92
      %s95 = sphi 0, %s94
      %s109 = sphi 0, %s95
      %s113 = sphi 0, %s113
      %s115 = sphi 0, %s113
      %s116 = sphi 0, %s115
      %s130 = sphi 0, %s116
      %s134 = sphi 0, %s134
      %s136 = sphi 0, %s134
      %s137 = sphi 0, %s136
      %s151 = sphi 0, %s137
      %s155 = sphi 0, %s155
      %s157 = sphi 0, %s155
      %s158 = sphi 0, %s157
      %s172 = sphi 0, %s158
      %s178 = sphi 0, %s180
      %s181 = sphi 0, %s178
      %s182 = sphi 0, %s181
      %s198 = sphi 0, %s182
    $region4: #{tpu_custom_call.1} parent=1 // loop_header_branch
      %19 = sbr.rel (%p17) target = $region8
    $region5: #{tpu_custom_call.1} parent=1 // loop_body
      %s21 = ssub.s32 %s16, 1
      %s22 = ssub.s32 %s16, 2
      %s23 = sadd.s32 %s16, 1
      %s24 = ssub.s32 %s16, %s23
      %p25 = scmp.eq.s32.totalorder %s24, 0
      %s27 = sadd.s32 %s26, 1
      %s28 = scalar_select %p25, %s26, %s27
      %p31 = pneg %p25
      %p32 = scmp.eq.s32.totalorder %s16, 1
      %p33 = por %p31, %p32
      %p34 = scmp.ne.s32.totalorder %s26, %s29
      %p35 = scmp.eq.s32.totalorder %s16, 0
      %p36 = por %p34, %p35
      %p37 = scmp.ne.s32.totalorder %s26, %s29
      %p38 = scmp.eq.s32.totalorder %s21, 1
      %p39 = por %p37, %p38
      %p40 = scmp.ne.s32.totalorder %s29, %s30
      %p41 = scmp.eq.s32.totalorder %s21, 0
      %p42 = por %p40, %p41
      %p43 = scmp.ne.s32.totalorder %s29, %s30
      %p44 = scmp.eq.s32.totalorder %s22, 1
      %p45 = por %p43, %p44
      %p47 = scmp.ne.s32.totalorder %s30, %s46
      %p48 = scmp.eq.s32.totalorder %s22, 0
      %p49 = por %p47, %p48
      %s51 = sadd.s32 %s50, 1
      %p54 = scmp.eq.s32.totalorder %s16, 1
      %p55 = scmp.ne.s32.totalorder %s50, %s52
      %p56 = scmp.eq.s32.totalorder %s16, 0
      %p57 = por %p55, %p56
      %p58 = scmp.ne.s32.totalorder %s50, %s52
      %p59 = scmp.eq.s32.totalorder %s21, 1
      %p60 = por %p58, %p59
      %p61 = scmp.ne.s32.totalorder %s52, %s53
      %p62 = scmp.eq.s32.totalorder %s21, 0
      %p63 = por %p61, %p62
      %p64 = scmp.ne.s32.totalorder %s52, %s53
      %p65 = scmp.eq.s32.totalorder %s22, 1
      %p66 = por %p64, %p65
      %p68 = scmp.ne.s32.totalorder %s53, %s67
      %p69 = scmp.eq.s32.totalorder %s22, 0
      %p70 = por %p68, %p69
      %s72 = sadd.s32 %s71, 1
      %p75 = scmp.eq.s32.totalorder %s16, 1
      %p76 = scmp.ne.s32.totalorder %s71, %s73
      %p77 = scmp.eq.s32.totalorder %s16, 0
      %p78 = por %p76, %p77
      %p79 = scmp.ne.s32.totalorder %s71, %s73
      %p80 = scmp.eq.s32.totalorder %s21, 1
      %p81 = por %p79, %p80
      %p82 = scmp.ne.s32.totalorder %s73, %s74
      %p83 = scmp.eq.s32.totalorder %s21, 0
      %p84 = por %p82, %p83
      %p85 = scmp.ne.s32.totalorder %s73, %s74
      %p86 = scmp.eq.s32.totalorder %s22, 1
      %p87 = por %p85, %p86
      %p89 = scmp.ne.s32.totalorder %s74, %s88
      %p90 = scmp.eq.s32.totalorder %s22, 0
      %p91 = por %p89, %p90
      %s93 = sadd.s32 %s92, 1
      %p96 = scmp.eq.s32.totalorder %s16, 1
      %p97 = scmp.ne.s32.totalorder %s92, %s94
      %p98 = scmp.eq.s32.totalorder %s16, 0
      %p99 = por %p97, %p98
      %p100 = scmp.ne.s32.totalorder %s92, %s94
      %p101 = scmp.eq.s32.totalorder %s21, 1
      %p102 = por %p100, %p101
      %p103 = scmp.ne.s32.totalorder %s94, %s95
      %p104 = scmp.eq.s32.totalorder %s21, 0
      %p105 = por %p103, %p104
      %p106 = scmp.ne.s32.totalorder %s94, %s95
      %p107 = scmp.eq.s32.totalorder %s22, 1
      %p108 = por %p106, %p107
      %p110 = scmp.ne.s32.totalorder %s95, %s109
      %p111 = scmp.eq.s32.totalorder %s22, 0
      %p112 = por %p110, %p111
      %s114 = sadd.s32 %s113, 1
      %p117 = scmp.eq.s32.totalorder %s16, 1
      %p118 = scmp.ne.s32.totalorder %s113, %s115
      %p119 = scmp.eq.s32.totalorder %s16, 0
      %p120 = por %p118, %p119
      %p121 = scmp.ne.s32.totalorder %s113, %s115
      %p122 = scmp.eq.s32.totalorder %s21, 1
      %p123 = por %p121, %p122
      %p124 = scmp.ne.s32.totalorder %s115, %s116
      %p125 = scmp.eq.s32.totalorder %s21, 0
      %p126 = por %p124, %p125
      %p127 = scmp.ne.s32.totalorder %s115, %s116
      %p128 = scmp.eq.s32.totalorder %s22, 1
      %p129 = por %p127, %p128
      %p131 = scmp.ne.s32.totalorder %s116, %s130
      %p132 = scmp.eq.s32.totalorder %s22, 0
      %p133 = por %p131, %p132
      %s135 = sadd.s32 %s134, 1
      %p138 = scmp.eq.s32.totalorder %s16, 1
      %p139 = scmp.ne.s32.totalorder %s134, %s136
      %p140 = scmp.eq.s32.totalorder %s16, 0
      %p141 = por %p139, %p140
      %p142 = scmp.ne.s32.totalorder %s134, %s136
      %p143 = scmp.eq.s32.totalorder %s21, 1
      %p144 = por %p142, %p143
      %p145 = scmp.ne.s32.totalorder %s136, %s137
      %p146 = scmp.eq.s32.totalorder %s21, 0
      %p147 = por %p145, %p146
      %p148 = scmp.ne.s32.totalorder %s136, %s137
      %p149 = scmp.eq.s32.totalorder %s22, 1
      %p150 = por %p148, %p149
      %p152 = scmp.ne.s32.totalorder %s137, %s151
      %p153 = scmp.eq.s32.totalorder %s22, 0
      %p154 = por %p152, %p153
      %s156 = sadd.s32 %s155, 1
      %p159 = scmp.eq.s32.totalorder %s16, 1
      %p160 = scmp.ne.s32.totalorder %s155, %s157
      %p161 = scmp.eq.s32.totalorder %s16, 0
      %p162 = por %p160, %p161
      %p163 = scmp.ne.s32.totalorder %s155, %s157
      %p164 = scmp.eq.s32.totalorder %s21, 1
      %p165 = por %p163, %p164
      %p166 = scmp.ne.s32.totalorder %s157, %s158
      %p167 = scmp.eq.s32.totalorder %s21, 0
      %p168 = por %p166, %p167
      %p169 = scmp.ne.s32.totalorder %s157, %s158
      %p170 = scmp.eq.s32.totalorder %s22, 1
      %p171 = por %p169, %p170
      %p173 = scmp.ne.s32.totalorder %s158, %s172
      %p174 = scmp.eq.s32.totalorder %s22, 0
      %p175 = por %p173, %p174
      %s176 = ssub.s32 %s16, %s23
      %p177 = scmp.eq.s32.totalorder %s176, 0
      %s179 = sadd.s32 %s178, 1
      %s180 = scalar_select %p177, %s178, %s179
      %p183 = pneg %p177
      %p184 = scmp.eq.s32.totalorder %s16, 1
      %p185 = por %p183, %p184
      %p186 = scmp.ne.s32.totalorder %s178, %s181
      %p187 = scmp.eq.s32.totalorder %s16, 0
      %p188 = por %p186, %p187
      %p189 = scmp.ne.s32.totalorder %s178, %s181
      %p190 = scmp.eq.s32.totalorder %s21, 1
      %p191 = por %p189, %p190
      %p192 = scmp.ne.s32.totalorder %s181, %s182
      %p193 = scmp.eq.s32.totalorder %s21, 0
      %p194 = por %p192, %p193
      %p195 = scmp.ne.s32.totalorder %s181, %s182
      %p196 = scmp.eq.s32.totalorder %s22, 1
      %p197 = por %p195, %p196
      %p199 = scmp.ne.s32.totalorder %s182, %s198
      %p200 = scmp.eq.s32.totalorder %s22, 0
      %p201 = por %p199, %p200
      %p202 = scmp.le.s32.totalorder 1, %s16
      %p203 = scmp.lt.s32.totalorder %s16, 3
      %p204 = pnand %p202, %p203
      %p205 = pneg %p204
      // Predicated region
      $region9: #{tpu_custom_call.1} parent=5 // pred_check
        _
      $region10: #{tpu_custom_call.1} parent=5 // pred_check_branch
        %207 = sbr.rel (%p204) target = $region12
      $region11: #{tpu_custom_call.1} parent=5 // pred_region
        %s208 = ssub.s32 %s16, 1
        // Predicated region
        $region13: #{tpu_custom_call.1} parent=11 // pred_check
          %p209 = pneg %p63
        $region14: #{tpu_custom_call.1} parent=11 // pred_check_branch
          %211 = sbr.rel (%p209) target = $region16
        $region15: #{tpu_custom_call.1} parent=11 // pred_region
          _
        $region16: #{tpu_custom_call.1} parent=11 // pred_fallthru
          _
        // Predicated region
        $region17: #{tpu_custom_call.1} parent=11 // pred_check
          %p212 = pneg %p84
        $region18: #{tpu_custom_call.1} parent=11 // pred_check_branch
          %214 = sbr.rel (%p212) target = $region20
        $region19: #{tpu_custom_call.1} parent=11 // pred_region
          _
        $region20: #{tpu_custom_call.1} parent=11 // pred_fallthru
          _
        // Predicated region
        $region21: #{tpu_custom_call.1} parent=11 // pred_check
          %p215 = pneg %p105
        $region22: #{tpu_custom_call.1} parent=11 // pred_check_branch
          %217 = sbr.rel (%p215) target = $region24
        $region23: #{tpu_custom_call.1} parent=11 // pred_region
          _
        $region24: #{tpu_custom_call.1} parent=11 // pred_fallthru
          _
        // Predicated region
        $region25: #{tpu_custom_call.1} parent=11 // pred_check
          %p218 = pneg %p126
        $region26: #{tpu_custom_call.1} parent=11 // pred_check_branch
          %220 = sbr.rel (%p218) target = $region28
        $region27: #{tpu_custom_call.1} parent=11 // pred_region
          _
        $region28: #{tpu_custom_call.1} parent=11 // pred_fallthru
          _
        // Predicated region
        $region29: #{tpu_custom_call.1} parent=11 // pred_check
          %p221 = pneg %p147
        $region30: #{tpu_custom_call.1} parent=11 // pred_check_branch
          %223 = sbr.rel (%p221) target = $region32
        $region31: #{tpu_custom_call.1} parent=11 // pred_region
          _
        $region32: #{tpu_custom_call.1} parent=11 // pred_fallthru
          _
        // Predicated region
        $region33: #{tpu_custom_call.1} parent=11 // pred_check
          %p224 = pneg %p168
        $region34: #{tpu_custom_call.1} parent=11 // pred_check_branch
          %226 = sbr.rel (%p224) target = $region36
        $region35: #{tpu_custom_call.1} parent=11 // pred_region
          _
        $region36: #{tpu_custom_call.1} parent=11 // pred_fallthru
          _
      $region12: #{tpu_custom_call.1} parent=5 // pred_fallthru
        _
      %p227 = scmp.lt.s32.totalorder %s16, 2
      // Predicated region
      $region37: #{tpu_custom_call.1} parent=5 // pred_check
        %p228 = pneg %p227
      $region38: #{tpu_custom_call.1} parent=5 // pred_check_branch
        %230 = sbr.rel (%p228) target = $region40
      $region39: #{tpu_custom_call.1} parent=5 // pred_region
        // Predicated region
        $region41: #{tpu_custom_call.1} parent=39 // pred_check
          %p231 = pneg %p36
        $region42: #{tpu_custom_call.1} parent=39 // pred_check_branch
          %233 = sbr.rel (%p231) target = $region44
        $region43: #{tpu_custom_call.1} parent=39 // pred_region
          %s234 = smul.u32 16, %s16
          %p235 = scmp.lt.s32.totalorder %s234, 31
          %s236 = scalar_select %p235, %s234, 31
          %s237 = smul.addr %s236, 8
          %s238 = scalar_lea.vmem %s0, %s237
          %s239 = smul.u32 16, %s16
        $region44: #{tpu_custom_call.1} parent=39 // pred_fallthru
          _
      $region40: #{tpu_custom_call.1} parent=5 // pred_fallthru
        _
      %p240 = scmp.le.s32.totalorder 1, %s16
      %p241 = scmp.lt.s32.totalorder %s16, 3
      %p242 = pnand %p240, %p241
      %p243 = pneg %p242
      // Predicated region
      $region45: #{tpu_custom_call.1} parent=5 // pred_check
        _
      $region46: #{tpu_custom_call.1} parent=5 // pred_check_branch
        %245 = sbr.rel (%p242) target = $region48
      $region47: #{tpu_custom_call.1} parent=5 // pred_region
        %s246 = ssub.s32 %s16, 1
        %s247 = smul.u32 16, %s21
        %p248 = scmp.lt.s32.totalorder %s247, 31
        %s249 = scalar_select %p248, %s247, 31
        %s250 = smul.addr %s249, 8
        %s251 = scalar_lea.vmem %s0, %s250
        %p252 = pneg %p42
        %p253 = pneg %p39
        %p254 = pneg %p63
        %p255 = pneg %p60
        %p256 = pneg %p84
        %p257 = pneg %p81
        %p258 = pneg %p105
        %p259 = pneg %p102
        %p260 = pneg %p126
        %p261 = pneg %p123
        %p262 = pneg %p147
        %p263 = pneg %p144
        %p264 = pneg %p168
        %p265 = pneg %p165
        %p266 = pneg %p194
        %p267 = pneg %p191
        %s268 = sand.u32 %s181, 1
        %s269 = scalar_lea.sflag [#allocation3], %s268
        %s270 = sand.u32 %s181, 1
        %s271 = smul.addr %s270, 128
        %s272 = scalar_lea.vmem [#allocation2], %s271
        %s273 = smul.u32 16, %s21
        %p274 = scmp.lt.s32.totalorder %s273, 31
        %s275 = scalar_select %p274, %s273, 31
        %s276 = smul.addr %s275, 8
        %s277 = scalar_lea.vmem %s0, %s276
        %s278 = smul.u32 16, %s21
        %s279 = smul.u32 16, %s21
        %v281 = vld [vmem:[%s277] sm:$0xff]
        %v282 = vld [vmem:[%s277 + $0x8] sm:$0xff]
        %v283 = vld [vmem:[%s277 + $0x10] sm:$0xff]
        %v284 = vld [vmem:[%s277 + $0x18] sm:$0xff]
        %v285 = vld [vmem:[%s277 + $0x20] sm:$0xff]
        %v286 = vld [vmem:[%s277 + $0x28] sm:$0xff]
        %v287 = vld [vmem:[%s277 + $0x30] sm:$0xff]
        %v288 = vld [vmem:[%s277 + $0x38] sm:$0xff]
        %v289 = vld [vmem:[%s277 + $0x40] sm:$0xff]
        %v290 = vld [vmem:[%s277 + $0x48] sm:$0xff]
        %v291 = vld [vmem:[%s277 + $0x50] sm:$0xff]
        %v292 = vld [vmem:[%s277 + $0x58] sm:$0xff]
        %v293 = vld [vmem:[%s277 + $0x60] sm:$0xff]
        %v294 = vld [vmem:[%s277 + $0x68] sm:$0xff]
        %v295 = vld [vmem:[%s277 + $0x70] sm:$0xff]
        %v296 = vld [vmem:[%s277 + $0x78] sm:$0xff]
        %v297 = vpack.c.bf16 %v282, %v281
        %v298 = vpack.c.bf16 %v284, %v283
        %v299 = vpack.c.bf16 %v286, %v285
        %v300 = vpack.c.bf16 %v288, %v287
        %v301 = vpack.c.bf16 %v290, %v289
        %v302 = vpack.c.bf16 %v292, %v291
        %v303 = vpack.c.bf16 %v294, %v293
        %v304 = vpack.c.bf16 %v296, %v295
        %v305 = vld [vmem:[%s1] sm:$0xf]
        %v306 = vld [vmem:[%s1 + $0x4] sm:$0xf]
        %v307 = vld [vmem:[%s2] sm:$0x1]
        %v309 = vlaneseq
        %v310 = vshrl.u32 %v309, 7
        %v311 = vsub.s32 0, %v310
        %v312 = vrot.slane %v307, %v311
        %v316 = vunpack.c.l.b16 %v305
        %v317 = vunpack.c.l.b16 %v306
        %v318 = vpack.c.b16 %v317, %v316
        %vm320 = vcmask 130048
        %v322 = vsel %vm320, %v297, 0
        %v325 = vsel %vm320, %v298, 0
        %v328 = vsel %vm320, %v299, 0
        %v331 = vsel %vm320, %v300, 0
        %v334 = vsel %vm320, %v301, 0
        %v337 = vsel %vm320, %v302, 0
        %v340 = vsel %vm320, %v303, 0
        %v343 = vsel %vm320, %v304, 0
        %345 = vmatprep.subr.bf16.mxu0 0
        %346 = vmatpush1.bf16.msra.mxu0 %v318
        %347 = vmatprep.subr.bf16.mxu0 0
        %348 = vmatpush1.bf16.msra.mxu0 0
        %349 = vmatprep.subr.bf16.mxu0 0
        %350 = vmatpush1.bf16.msra.mxu0 0
        %351 = vmatprep.subr.bf16.mxu0 0
        %352 = vmatpush1.bf16.msra.mxu0 0
        %353 = vmatprep.subr.bf16.mxu0 0
        %354 = vmatpush1.bf16.msra.mxu0 0
        %355 = vmatprep.subr.bf16.mxu0 0
        %356 = vmatpush1.bf16.msra.mxu0 0
        %357 = vmatprep.subr.bf16.mxu0 0
        %358 = vmatpush1.bf16.msra.mxu0 0
        %359 = vmatprep.subr.bf16.mxu0 0
        %360 = vmatpush1.bf16.msra.mxu0 0
        %361 = vmatprep.subr.bf16.mxu0 0
        %362 = vmatpush1.bf16.msra.mxu0 0
        %363 = vmatprep.subr.bf16.mxu0 0
        %364 = vmatpush1.bf16.msra.mxu0 0
        %365 = vmatprep.subr.bf16.mxu0 0
        %366 = vmatpush1.bf16.msra.mxu0 0
        %367 = vmatprep.subr.bf16.mxu0 0
        %368 = vmatpush1.bf16.msra.mxu0 0
        %369 = vmatprep.subr.bf16.mxu0 0
        %370 = vmatpush1.bf16.msra.mxu0 0
        %371 = vmatprep.subr.bf16.mxu0 0
        %372 = vmatpush1.bf16.msra.mxu0 0
        %373 = vmatprep.subr.bf16.mxu0 0
        %374 = vmatpush1.bf16.msra.mxu0 0
        %375 = vmatprep.subr.bf16.mxu0 0
        %376 = vmatpush1.bf16.msra.mxu0 0
        %377 = vmatprep.mubr.bf16.mxu0 0
        %378 = vmatmul.mubr.bf16.gmra.mrb[0].mxu0 %v322
        %v379 = vpop.f32.mrb[0].mxu0
        %v380 = vadd.f32 %v312, %v379
        %v381 = vpop.f32.mrb[0].mxu0
        %v382 = vpop.f32.mrb[0].mxu0
        %v383 = vadd.f32 %v312, %v382
        %v384 = vpop.f32.mrb[0].mxu0
        %385 = vmatprep.mubr.bf16.mxu0 0
        %386 = vmatmul.mubr.bf16.gmra.mrb[0].mxu0 %v325
        %v387 = vpop.f32.mrb[0].mxu0
        %v388 = vadd.f32 %v312, %v387
        %v389 = vpop.f32.mrb[0].mxu0
        %v390 = vpop.f32.mrb[0].mxu0
        %v391 = vadd.f32 %v312, %v390
        %v392 = vpop.f32.mrb[0].mxu0
        %393 = vmatprep.mubr.bf16.mxu0 0
        %394 = vmatmul.mubr.bf16.gmra.mrb[0].mxu0 %v328
        %v395 = vpop.f32.mrb[0].mxu0
        %v396 = vadd.f32 %v312, %v395
        %v397 = vpop.f32.mrb[0].mxu0
        %v398 = vpop.f32.mrb[0].mxu0
        %v399 = vadd.f32 %v312, %v398
        %v400 = vpop.f32.mrb[0].mxu0
        %401 = vmatprep.mubr.bf16.mxu0 0
        %402 = vmatmul.mubr.bf16.gmra.mrb[0].mxu0 %v331
        %v403 = vpop.f32.mrb[0].mxu0
        %v404 = vadd.f32 %v312, %v403
        %v405 = vpop.f32.mrb[0].mxu0
        %v406 = vpop.f32.mrb[0].mxu0
        %v407 = vadd.f32 %v312, %v406
        %v408 = vpop.f32.mrb[0].mxu0
        %409 = vmatprep.mubr.bf16.mxu0 0
        %410 = vmatmul.mubr.bf16.gmra.mrb[0].mxu0 %v334
        %v411 = vpop.f32.mrb[0].mxu0
        %v412 = vadd.f32 %v312, %v411
        %v413 = vpop.f32.mrb[0].mxu0
        %v414 = vpop.f32.mrb[0].mxu0
        %v415 = vadd.f32 %v312, %v414
        %v416 = vpop.f32.mrb[0].mxu0
        %417 = vmatprep.mubr.bf16.mxu0 0
        %418 = vmatmul.mubr.bf16.gmra.mrb[0].mxu0 %v337
        %v419 = vpop.f32.mrb[0].mxu0
        %v420 = vadd.f32 %v312, %v419
        %v421 = vpop.f32.mrb[0].mxu0
        %v422 = vpop.f32.mrb[0].mxu0
        %v423 = vadd.f32 %v312, %v422
        %v424 = vpop.f32.mrb[0].mxu0
        %425 = vmatprep.mubr.bf16.mxu0 0
        %426 = vmatmul.mubr.bf16.gmra.mrb[0].mxu0 %v340
        %v427 = vpop.f32.mrb[0].mxu0
        %v428 = vadd.f32 %v312, %v427
        %v429 = vpop.f32.mrb[0].mxu0
        %v430 = vpop.f32.mrb[0].mxu0
        %v431 = vadd.f32 %v312, %v430
        %v432 = vpop.f32.mrb[0].mxu0
        %433 = vmatprep.mubr.bf16.mxu0 0
        %434 = vmatmul.mubr.bf16.gmra.mrb[0].mxu0 %v343
        %v435 = vpop.f32.mrb[0].mxu0
        %v436 = vadd.f32 %v312, %v435
        %v437 = vpop.f32.mrb[0].mxu0
        %v438 = vpop.f32.mrb[0].mxu0
        %v439 = vadd.f32 %v312, %v438
        %v440 = vpop.f32.mrb[0].mxu0
        %441 = vdwg.mxu0
        %v442 = vmax.f32 %v380, 0.0
        %v443 = vmax.f32 %v383, 0.0
        %v444 = vmax.f32 %v388, 0.0
        %v445 = vmax.f32 %v391, 0.0
        %v446 = vmax.f32 %v396, 0.0
        %v447 = vmax.f32 %v399, 0.0
        %v448 = vmax.f32 %v404, 0.0
        %v449 = vmax.f32 %v407, 0.0
        %v450 = vmax.f32 %v412, 0.0
        %v451 = vmax.f32 %v415, 0.0
        %v452 = vmax.f32 %v420, 0.0
        %v453 = vmax.f32 %v423, 0.0
        %v454 = vmax.f32 %v428, 0.0
        %v455 = vmax.f32 %v431, 0.0
        %v456 = vmax.f32 %v436, 0.0
        %v457 = vmax.f32 %v439, 0.0
        %v458 = vpack.c.bf16 %v443, %v442
        %v459 = vpack.c.bf16 %v445, %v444
        %v460 = vpack.c.bf16 %v447, %v446
        %v461 = vpack.c.bf16 %v449, %v448
        %v462 = vpack.c.bf16 %v451, %v450
        %v463 = vpack.c.bf16 %v453, %v452
        %v464 = vpack.c.bf16 %v455, %v454
        %v465 = vpack.c.bf16 %v457, %v456
        %v466 = vld [vmem:[%s3] sm:$0xf]
        %v467 = vld [vmem:[%s3 + $0x4] sm:$0xf]
        %v468 = vld [vmem:[%s3 + $0x8] sm:$0xf]
        %v469 = vld [vmem:[%s3 + $0xc] sm:$0xf]
        %v470 = vld [vmem:[%s3 + $0x10] sm:$0xf]
        %v471 = vld [vmem:[%s3 + $0x14] sm:$0xf]
        %v472 = vld [vmem:[%s3 + $0x18] sm:$0xf]
        %v473 = vld [vmem:[%s3 + $0x1c] sm:$0xf]
        %v474 = vld [vmem:[%s3 + $0x20] sm:$0xf]
        %v475 = vld [vmem:[%s3 + $0x24] sm:$0xf]
        %v476 = vld [vmem:[%s3 + $0x28] sm:$0xf]
        %v477 = vld [vmem:[%s3 + $0x2c] sm:$0xf]
        %v478 = vld [vmem:[%s3 + $0x30] sm:$0xf]
        %v479 = vld [vmem:[%s3 + $0x34] sm:$0xf]
        %v480 = vld [vmem:[%s3 + $0x38] sm:$0xf]
        %v481 = vld [vmem:[%s3 + $0x3c] sm:$0xf]
        %v482 = vld [vmem:[%s4] sm:$0x1]
        %v484 = vlaneseq
        %v485 = vshrl.u32 %v484, 7
        %v486 = vsub.s32 0, %v485
        %v487 = vrot.slane %v482, %v486
        %v505 = vunpack.c.l.b16 %v466
        %v506 = vunpack.c.l.b16 %v467
        %v507 = vunpack.c.l.b16 %v468
        %v508 = vunpack.c.l.b16 %v469
        %v509 = vunpack.c.l.b16 %v470
        %v510 = vunpack.c.l.b16 %v471
        %v511 = vunpack.c.l.b16 %v472
        %v512 = vunpack.c.l.b16 %v473
        %v513 = vunpack.c.l.b16 %v474
        %v514 = vunpack.c.l.b16 %v475
        %v515 = vunpack.c.l.b16 %v476
        %v516 = vunpack.c.l.b16 %v477
        %v517 = vunpack.c.l.b16 %v478
        %v518 = vunpack.c.l.b16 %v479
        %v519 = vunpack.c.l.b16 %v480
        %v520 = vunpack.c.l.b16 %v481
        %v521 = vpack.c.b16 %v506, %v505
        %v522 = vpack.c.b16 %v508, %v507
        %v523 = vpack.c.b16 %v510, %v509
        %v524 = vpack.c.b16 %v512, %v511
        %v525 = vpack.c.b16 %v514, %v513
        %v526 = vpack.c.b16 %v516, %v515
        %v527 = vpack.c.b16 %v518, %v517
        %v528 = vpack.c.b16 %v520, %v519
        %537 = vmatprep.subr.bf16.mxu0 0
        %538 = vmatpush1.bf16.msra.mxu0 %v521
        %539 = vmatprep.subr.bf16.mxu0 0
        %540 = vmatpush1.bf16.msra.mxu0 %v522
        %541 = vmatprep.subr.bf16.mxu0 0
        %542 = vmatpush1.bf16.msra.mxu0 %v523
        %543 = vmatprep.subr.bf16.mxu0 0
        %544 = vmatpush1.bf16.msra.mxu0 %v524
        %545 = vmatprep.subr.bf16.mxu0 0
        %546 = vmatpush1.bf16.msra.mxu0 %v525
        %547 = vmatprep.subr.bf16.mxu0 0
        %548 = vmatpush1.bf16.msra.mxu0 %v526
        %549 = vmatprep.subr.bf16.mxu0 0
        %550 = vmatpush1.bf16.msra.mxu0 %v527
        %551 = vmatprep.subr.bf16.mxu0 0
        %552 = vmatpush1.bf16.msra.mxu0 %v528
        %553 = vmatprep.subr.bf16.mxu0 0
        %554 = vmatpush1.bf16.msra.mxu0 0
        %555 = vmatprep.subr.bf16.mxu0 0
        %556 = vmatpush1.bf16.msra.mxu0 0
        %557 = vmatprep.subr.bf16.mxu0 0
        %558 = vmatpush1.bf16.msra.mxu0 0
        %559 = vmatprep.subr.bf16.mxu0 0
        %560 = vmatpush1.bf16.msra.mxu0 0
        %561 = vmatprep.subr.bf16.mxu0 0
        %562 = vmatpush1.bf16.msra.mxu0 0
        %563 = vmatprep.subr.bf16.mxu0 0
        %564 = vmatpush1.bf16.msra.mxu0 0
        %565 = vmatprep.subr.bf16.mxu0 0
        %566 = vmatpush1.bf16.msra.mxu0 0
        %567 = vmatprep.subr.bf16.mxu0 0
        %568 = vmatpush1.bf16.msra.mxu0 0
        %569 = vmatprep.mubr.bf16.mxu0 0
        %570 = vmatmul.mubr.bf16.gmra.mrb[0].mxu0 %v458
        %v571 = vpop.f32.mrb[0].mxu0
        %v572 = vadd.f32 %v487, %v571
        %v573 = vpop.f32.mrb[0].mxu0
        %v574 = vpop.f32.mrb[0].mxu0
        %v575 = vadd.f32 %v487, %v574
        %v576 = vpop.f32.mrb[0].mxu0
        %577 = vmatprep.mubr.bf16.mxu0 0
        %578 = vmatmul.mubr.bf16.gmra.mrb[0].mxu0 %v459
        %v579 = vpop.f32.mrb[0].mxu0
        %v580 = vadd.f32 %v487, %v579
        %v581 = vpop.f32.mrb[0].mxu0
        %v582 = vpop.f32.mrb[0].mxu0
        %v583 = vadd.f32 %v487, %v582
        %v584 = vpop.f32.mrb[0].mxu0
        %585 = vmatprep.mubr.bf16.mxu0 0
        %586 = vmatmul.mubr.bf16.gmra.mrb[0].mxu0 %v460
        %v587 = vpop.f32.mrb[0].mxu0
        %v588 = vadd.f32 %v487, %v587
        %v589 = vpop.f32.mrb[0].mxu0
        %v590 = vpop.f32.mrb[0].mxu0
        %v591 = vadd.f32 %v487, %v590
        %v592 = vpop.f32.mrb[0].mxu0
        %593 = vmatprep.mubr.bf16.mxu0 0
        %594 = vmatmul.mubr.bf16.gmra.mrb[0].mxu0 %v461
        %v595 = vpop.f32.mrb[0].mxu0
        %v596 = vadd.f32 %v487, %v595
        %v597 = vpop.f32.mrb[0].mxu0
        %v598 = vpop.f32.mrb[0].mxu0
        %v599 = vadd.f32 %v487, %v598
        %v600 = vpop.f32.mrb[0].mxu0
        %601 = vmatprep.mubr.bf16.mxu0 0
        %602 = vmatmul.mubr.bf16.gmra.mrb[0].mxu0 %v462
        %v603 = vpop.f32.mrb[0].mxu0
        %v604 = vadd.f32 %v487, %v603
        %v605 = vpop.f32.mrb[0].mxu0
        %v606 = vpop.f32.mrb[0].mxu0
        %v607 = vadd.f32 %v487, %v606
        %v608 = vpop.f32.mrb[0].mxu0
        %609 = vmatprep.mubr.bf16.mxu0 0
        %610 = vmatmul.mubr.bf16.gmra.mrb[0].mxu0 %v463
        %v611 = vpop.f32.mrb[0].mxu0
        %v612 = vadd.f32 %v487, %v611
        %v613 = vpop.f32.mrb[0].mxu0
        %v614 = vpop.f32.mrb[0].mxu0
        %v615 = vadd.f32 %v487, %v614
        %v616 = vpop.f32.mrb[0].mxu0
        %617 = vmatprep.mubr.bf16.mxu0 0
        %618 = vmatmul.mubr.bf16.gmra.mrb[0].mxu0 %v464
        %v619 = vpop.f32.mrb[0].mxu0
        %v620 = vadd.f32 %v487, %v619
        %v621 = vpop.f32.mrb[0].mxu0
        %v622 = vpop.f32.mrb[0].mxu0
        %v623 = vadd.f32 %v487, %v622
        %v624 = vpop.f32.mrb[0].mxu0
        %625 = vmatprep.mubr.bf16.mxu0 0
        %626 = vmatmul.mubr.bf16.gmra.mrb[0].mxu0 %v465
        %v627 = vpop.f32.mrb[0].mxu0
        %v628 = vadd.f32 %v487, %v627
        %v629 = vpop.f32.mrb[0].mxu0
        %v630 = vpop.f32.mrb[0].mxu0
        %v631 = vadd.f32 %v487, %v630
        %v632 = vpop.f32.mrb[0].mxu0
        %633 = vdwg.mxu0
        %v634 = vmax.f32 %v572, 0.0
        %v635 = vmax.f32 %v575, 0.0
        %v636 = vmax.f32 %v580, 0.0
        %v637 = vmax.f32 %v583, 0.0
        %v638 = vmax.f32 %v588, 0.0
        %v639 = vmax.f32 %v591, 0.0
        %v640 = vmax.f32 %v596, 0.0
        %v641 = vmax.f32 %v599, 0.0
        %v642 = vmax.f32 %v604, 0.0
        %v643 = vmax.f32 %v607, 0.0
        %v644 = vmax.f32 %v612, 0.0
        %v645 = vmax.f32 %v615, 0.0
        %v646 = vmax.f32 %v620, 0.0
        %v647 = vmax.f32 %v623, 0.0
        %v648 = vmax.f32 %v628, 0.0
        %v649 = vmax.f32 %v631, 0.0
        %v650 = vpack.c.bf16 %v635, %v634
        %v651 = vpack.c.bf16 %v637, %v636
        %v652 = vpack.c.bf16 %v639, %v638
        %v653 = vpack.c.bf16 %v641, %v640
        %v654 = vpack.c.bf16 %v643, %v642
        %v655 = vpack.c.bf16 %v645, %v644
        %v656 = vpack.c.bf16 %v647, %v646
        %v657 = vpack.c.bf16 %v649, %v648
        %v658 = vld [vmem:[%s5] sm:$0xf]
        %v659 = vld [vmem:[%s5 + $0x4] sm:$0xf]
        %v660 = vld [vmem:[%s5 + $0x8] sm:$0xf]
        %v661 = vld [vmem:[%s5 + $0xc] sm:$0xf]
        %v662 = vld [vmem:[%s5 + $0x10] sm:$0xf]
        %v663 = vld [vmem:[%s5 + $0x14] sm:$0xf]
        %v664 = vld [vmem:[%s5 + $0x18] sm:$0xf]
        %v665 = vld [vmem:[%s5 + $0x1c] sm:$0xf]
        %v666 = vld [vmem:[%s6] sm:$0x1]
        %v668 = vlaneseq
        %v669 = vshrl.u32 %v668, 7
        %v670 = vsub.s32 0, %v669
        %v671 = vrot.slane %v666, %v670
        %v681 = vunpack.c.l.b16 %v658
        %v682 = vunpack.c.l.b16 %v659
        %v683 = vunpack.c.l.b16 %v660
        %v684 = vunpack.c.l.b16 %v661
        %v685 = vunpack.c.l.b16 %v662
        %v686 = vunpack.c.l.b16 %v663
        %v687 = vunpack.c.l.b16 %v664
        %v688 = vunpack.c.l.b16 %v665
        %v689 = vpack.c.b16 %v682, %v681
        %v690 = vpack.c.b16 %v684, %v683
        %v691 = vpack.c.b16 %v686, %v685
        %v692 = vpack.c.b16 %v688, %v687
        %vm697 = vcmask 523264
        %v699 = vsel %vm697, %v650, 0
        %v702 = vsel %vm697, %v651, 0
        %v705 = vsel %vm697, %v652, 0
        %v708 = vsel %vm697, %v653, 0
        %v711 = vsel %vm697, %v654, 0
        %v714 = vsel %vm697, %v655, 0
        %v717 = vsel %vm697, %v656, 0
        %v720 = vsel %vm697, %v657, 0
        %722 = vmatprep.subr.bf16.mxu0 0
        %723 = vmatpush1.bf16.msra.mxu0 %v689
        %724 = vmatprep.subr.bf16.mxu0 0
        %725 = vmatpush1.bf16.msra.mxu0 %v690
        %726 = vmatprep.subr.bf16.mxu0 0
        %727 = vmatpush1.bf16.msra.mxu0 %v691
        %728 = vmatprep.subr.bf16.mxu0 0
        %729 = vmatpush1.bf16.msra.mxu0 %v692
        %730 = vmatprep.subr.bf16.mxu0 0
        %731 = vmatpush1.bf16.msra.mxu0 0
        %732 = vmatprep.subr.bf16.mxu0 0
        %733 = vmatpush1.bf16.msra.mxu0 0
        %734 = vmatprep.subr.bf16.mxu0 0
        %735 = vmatpush1.bf16.msra.mxu0 0
        %736 = vmatprep.subr.bf16.mxu0 0
        %737 = vmatpush1.bf16.msra.mxu0 0
        %738 = vmatprep.subr.bf16.mxu0 0
        %739 = vmatpush1.bf16.msra.mxu0 0
        %740 = vmatprep.subr.bf16.mxu0 0
        %741 = vmatpush1.bf16.msra.mxu0 0
        %742 = vmatprep.subr.bf16.mxu0 0
        %743 = vmatpush1.bf16.msra.mxu0 0
        %744 = vmatprep.subr.bf16.mxu0 0
        %745 = vmatpush1.bf16.msra.mxu0 0
        %746 = vmatprep.subr.bf16.mxu0 0
        %747 = vmatpush1.bf16.msra.mxu0 0
        %748 = vmatprep.subr.bf16.mxu0 0
        %749 = vmatpush1.bf16.msra.mxu0 0
        %750 = vmatprep.subr.bf16.mxu0 0
        %751 = vmatpush1.bf16.msra.mxu0 0
        %752 = vmatprep.subr.bf16.mxu0 0
        %753 = vmatpush1.bf16.msra.mxu0 0
        %754 = vmatprep.mubr.bf16.mxu0 0
        %755 = vmatmul.mubr.bf16.gmra.mrb[0].mxu0 %v699
        %v756 = vpop.f32.mrb[0].mxu0
        %v757 = vadd.f32 %v671, %v756
        %v758 = vpop.f32.mrb[0].mxu0
        %v759 = vpop.f32.mrb[0].mxu0
        %v760 = vadd.f32 %v671, %v759
        %v761 = vpop.f32.mrb[0].mxu0
        %762 = vmatprep.mubr.bf16.mxu0 0
        %763 = vmatmul.mubr.bf16.gmra.mrb[0].mxu0 %v702
        %v764 = vpop.f32.mrb[0].mxu0
        %v765 = vadd.f32 %v671, %v764
        %v766 = vpop.f32.mrb[0].mxu0
        %v767 = vpop.f32.mrb[0].mxu0
        %v768 = vadd.f32 %v671, %v767
        %v769 = vpop.f32.mrb[0].mxu0
        %770 = vmatprep.mubr.bf16.mxu0 0
        %771 = vmatmul.mubr.bf16.gmra.mrb[0].mxu0 %v705
        %v772 = vpop.f32.mrb[0].mxu0
        %v773 = vadd.f32 %v671, %v772
        %v774 = vpop.f32.mrb[0].mxu0
        %v775 = vpop.f32.mrb[0].mxu0
        %v776 = vadd.f32 %v671, %v775
        %v777 = vpop.f32.mrb[0].mxu0
        %778 = vmatprep.mubr.bf16.mxu0 0
        %779 = vmatmul.mubr.bf16.gmra.mrb[0].mxu0 %v708
        %v780 = vpop.f32.mrb[0].mxu0
        %v781 = vadd.f32 %v671, %v780
        %v782 = vpop.f32.mrb[0].mxu0
        %v783 = vpop.f32.mrb[0].mxu0
        %v784 = vadd.f32 %v671, %v783
        %v785 = vpop.f32.mrb[0].mxu0
        %786 = vmatprep.mubr.bf16.mxu0 0
        %787 = vmatmul.mubr.bf16.gmra.mrb[0].mxu0 %v711
        %v788 = vpop.f32.mrb[0].mxu0
        %v789 = vadd.f32 %v671, %v788
        %v790 = vpop.f32.mrb[0].mxu0
        %v791 = vpop.f32.mrb[0].mxu0
        %v792 = vadd.f32 %v671, %v791
        %v793 = vpop.f32.mrb[0].mxu0
        %794 = vmatprep.mubr.bf16.mxu0 0
        %795 = vmatmul.mubr.bf16.gmra.mrb[0].mxu0 %v714
        %v796 = vpop.f32.mrb[0].mxu0
        %v797 = vadd.f32 %v671, %v796
        %v798 = vpop.f32.mrb[0].mxu0
        %v799 = vpop.f32.mrb[0].mxu0
        %v800 = vadd.f32 %v671, %v799
        %v801 = vpop.f32.mrb[0].mxu0
        %802 = vmatprep.mubr.bf16.mxu0 0
        %803 = vmatmul.mubr.bf16.gmra.mrb[0].mxu0 %v717
        %v804 = vpop.f32.mrb[0].mxu0
        %v805 = vadd.f32 %v671, %v804
        %v806 = vpop.f32.mrb[0].mxu0
        %v807 = vpop.f32.mrb[0].mxu0
        %v808 = vadd.f32 %v671, %v807
        %v809 = vpop.f32.mrb[0].mxu0
        %810 = vmatprep.mubr.bf16.mxu0 0
        %811 = vmatmul.mubr.bf16.gmra.mrb[0].mxu0 %v720
        %v812 = vpop.f32.mrb[0].mxu0
        %v813 = vadd.f32 %v671, %v812
        %v814 = vpop.f32.mrb[0].mxu0
        %v815 = vpop.f32.mrb[0].mxu0
        %v816 = vadd.f32 %v671, %v815
        %v817 = vpop.f32.mrb[0].mxu0
        %818 = vdwg.mxu0
        %819 = vst [vmem:[%s272] sm:$0xff] %v757
        %820 = vst [vmem:[%s272 + $0x8] sm:$0xff] %v760
        %821 = vst [vmem:[%s272 + $0x10] sm:$0xff] %v765
        %822 = vst [vmem:[%s272 + $0x18] sm:$0xff] %v768
        %823 = vst [vmem:[%s272 + $0x20] sm:$0xff] %v773
        %824 = vst [vmem:[%s272 + $0x28] sm:$0xff] %v776
        %825 = vst [vmem:[%s272 + $0x30] sm:$0xff] %v781
        %826 = vst [vmem:[%s272 + $0x38] sm:$0xff] %v784
        %827 = vst [vmem:[%s272 + $0x40] sm:$0xff] %v789
        %828 = vst [vmem:[%s272 + $0x48] sm:$0xff] %v792
        %829 = vst [vmem:[%s272 + $0x50] sm:$0xff] %v797
        %830 = vst [vmem:[%s272 + $0x58] sm:$0xff] %v800
        %831 = vst [vmem:[%s272 + $0x60] sm:$0xff] %v805
        %832 = vst [vmem:[%s272 + $0x68] sm:$0xff] %v808
        %833 = vst [vmem:[%s272 + $0x70] sm:$0xff] %v813
        %834 = vst [vmem:[%s272 + $0x78] sm:$0xff] %v816
        %s835 = sand.u32 %s181, 1
        %s836 = scalar_lea.sflag [#allocation3], %s835
        %s837 = sand.u32 %s181, 1
        %s838 = smul.addr %s837, 128
        %s839 = scalar_lea.vmem [#allocation2], %s838
        // Predicated region
        $region49: #{tpu_custom_call.1} parent=47 // pred_check
          %p840 = pneg %p191
        $region50: #{tpu_custom_call.1} parent=47 // pred_check_branch
          %842 = sbr.rel (%p840) target = $region52
        $region51: #{tpu_custom_call.1} parent=47 // pred_region
          %s843 = smul.u32 16, %s21
          %s845 = ssub.s32 2048, 2048
          %846 = vsyncadd %s836, %s845
          %s847 = smul.addr %s843, 128
          %s848 = scalar_lea.hbm %s7, %s847
          %s849 = sshll.u32 %s839, 4
          %s850 = int_to_ptr.vmem [resolvable:$true] %s849
          %855 = dma.vmem_to_hbm [thread:$0]  %s850, 2048, %s848, %s836, 128, 128, 8
        $region52: #{tpu_custom_call.1} parent=47 // pred_fallthru
          _
      $region48: #{tpu_custom_call.1} parent=5 // pred_fallthru
        _
      %p856 = scmp.le.s32.totalorder 2, %s16
      // Predicated region
      $region53: #{tpu_custom_call.1} parent=5 // pred_check
        %p857 = pneg %p856
      $region54: #{tpu_custom_call.1} parent=5 // pred_check_branch
        %859 = sbr.rel (%p857) target = $region56
      $region55: #{tpu_custom_call.1} parent=5 // pred_region
        %s860 = ssub.s32 %s16, 2
        // Predicated region
        $region57: #{tpu_custom_call.1} parent=55 // pred_check
          %p861 = pneg %p197
        $region58: #{tpu_custom_call.1} parent=55 // pred_check_branch
          %863 = sbr.rel (%p861) target = $region60
        $region59: #{tpu_custom_call.1} parent=55 // pred_region
          %s864 = sand.u32 %s182, 1
          %s865 = scalar_lea.sflag [#allocation3], %s864
          %s866 = sand.u32 %s182, 1
          %s867 = smul.addr %s866, 128
          %s868 = scalar_lea.vmem [#allocation2], %s867
          %869 = dma.done %s865, 2048
        $region60: #{tpu_custom_call.1} parent=55 // pred_fallthru
          _
      $region56: #{tpu_custom_call.1} parent=5 // pred_fallthru
        _
    $region6: #{tpu_custom_call.1} parent=1 // loop_footer
      %s20 = sadd.s32 1, %s16
    $region7: #{tpu_custom_call.1} parent=1 // loop_footer_branch
      %15 = sbr.rel target = $region3
    $region8: #{tpu_custom_call.1} parent=1 // loop_exit
      _
    %870 = vsyncpa [#allocation3], 1
    %s871 = scalar_lea.sflag [#allocation3], 1
    %872 = vsyncpa %s871, 1

</llo_original>
